<compile_context>
chip_gen: v6e
topology: v6e:2x2x1
jax: 0.10.0
libtpu: 0.0.40
codegen_flags: <defaults>
</compile_context>

<pallas_src>
import functools

import jax
import jax.numpy as jnp
from jax.experimental import pallas as pl
from jax.experimental.pallas import tpu as pltpu


def _round_up(x, m):
    return ((x + m - 1) // m) * m


def _fused_mlp_kernel(x_ref, w1_ref, b1_ref, w2_ref, b2_ref, o_ref, h_ref):
    """o = (x @ W1 + b1) @ W2 + b2, fused in one kernel body.

    grid = (M_blocks, N_blocks).  The hidden activation for the current batch
    tile is computed once (at the first N block) into the VMEM scratch h_ref
    and reused for every layer-2 column tile.  Biases are added exactly once
    per tile on the f32 accumulator before the final cast.
    """
    j = pl.program_id(1)

    @pl.when(j == 0)
    def _():
        h_ref[...] = (
            jnp.dot(
                x_ref[...].astype(w1_ref.dtype),
                w1_ref[...],
                preferred_element_type=jnp.float32,
            )
            + b1_ref[...]
        )

    o_ref[...] = (
        jnp.dot(
            h_ref[...].astype(w2_ref.dtype),
            w2_ref[...],
            preferred_element_type=jnp.float32,
        )
        + b2_ref[...]
    ).astype(o_ref.dtype)


def fused_mlp(x, w1, b1, w2, b2, *, tn=256):
    """Fused two-layer linear: (x @ w1 + b1) @ w2 + b2.

    x : [M, K]              (batch, feat_dim)
    w1: [K, H],  b1: [H]    (layer-1 weight stored [in, out])
    w2: [H, N],  b2: [N]    (layer-2 weight stored [in, out])
    Returns [M, N] in x.dtype.  Ragged M / N handled by zero padding.
    """
    M, K = x.shape
    K1, H = w1.shape
    H2, N = w2.shape
    assert K == K1 and H == H2 and b1.shape == (H,) and b2.shape == (N,)

    out_dtype = x.dtype
    f32 = jnp.float32

    # ---- padding / tile selection ---------------------------------------
    M_pad = max(_round_up(M, 8), 8)          # sublane multiple
    tm = min(M_pad, 128)                     # wide batch tile ("parallel" axis)
    M_pad = _round_up(M_pad, tm)

    N_pad = _round_up(N, 128)                # lane multiple => dense stores
    tn = _round_up(min(tn, N_pad), 128)
    N_pad = _round_up(N_pad, tn)

    xp = x if M_pad == M else jnp.pad(x, ((0, M_pad - M), (0, 0)))
    w2p = w2 if N_pad == N else jnp.pad(w2, ((0, 0), (0, N_pad - N)))
    b2p = b2 if N_pad == N else jnp.pad(b2, (0, N_pad - N))

    b1_2d = b1.astype(f32).reshape(1, H)     # biases always added in f32
    b2_2d = b2p.astype(f32).reshape(1, N_pad)

    grid = (M_pad // tm, N_pad // tn)

    out = pl.pallas_call(
        _fused_mlp_kernel,
        out_shape=jax.ShapeDtypeStruct((M_pad, N_pad), out_dtype),
        grid_spec=pltpu.PrefetchScalarGridSpec(
            num_scalar_prefetch=0,
            grid=grid,
            in_specs=[
                pl.BlockSpec((tm, K), lambda i, j: (i, 0)),   # x batch tile
                pl.BlockSpec((K, H), lambda i, j: (0, 0)),    # W1 (VMEM-resident)
                pl.BlockSpec((1, H), lambda i, j: (0, 0)),    # b1 (VMEM-resident)
                pl.BlockSpec((H, tn), lambda i, j: (0, j)),   # W2 column tile
                pl.BlockSpec((1, tn), lambda i, j: (0, j)),   # b2 tile
            ],
            out_specs=pl.BlockSpec((tm, tn), lambda i, j: (i, j)),
            scratch_shapes=[pltpu.VMEM((tm, H), jnp.float32)],  # hidden acts
        ),
        compiler_params=pltpu.CompilerParams(
            dimension_semantics=("parallel", "arbitrary"),
        ),
    )(xp, w1, b1_2d, w2p, b2_2d)

    return out[:M, :N]


class ClassificationModelPallas:
    """JAX/Pallas port of finetuning/derive_net.py::ClassificationModel."""

    def __init__(self, feat_dim=128, num_classes=256, dtype=jnp.float32,
                 key=jax.random.PRNGKey(0)):
        k1, k2, k3, k4 = jax.random.split(key, 4)
        s1 = 1.0 / (feat_dim ** 0.5)
        # Weights stored [in, out] (transposed vs. PyTorch's [out, in]) so the
        # kernel computes plain x @ W + b on the MXU.  `dtype=jnp.bfloat16`
        # enables the native bf16 MXU path on v5e/v6e/v7x; accumulation and
        # bias adds remain f32 inside the kernel.
        self.w1 = jax.random.uniform(
            k1, (feat_dim, feat_dim), jnp.float32, -s1, s1).astype(dtype)
        self.b1 = jax.random.uniform(k2, (feat_dim,), jnp.float32, -s1, s1)
        self.w2 = jax.random.uniform(
            k3, (feat_dim, num_classes), jnp.float32, -s1, s1).astype(dtype)
        self.b2 = jax.random.uniform(k4, (num_classes,), jnp.float32, -s1, s1)

    @functools.partial(jax.jit, static_argnums=0)
    def __call__(self, x):
        return fused_mlp(x, self.w1, self.b1, self.w2, self.b2)


if __name__ == "__main__":
    key = jax.random.PRNGKey(0)

    def _check(batch, feat_dim, num_classes, subkey):
        kx, kp = jax.random.split(subkey)
        x = jax.random.normal(kx, (batch, feat_dim), dtype=jnp.float32)
        model = ClassificationModelPallas(
            feat_dim=feat_dim, num_classes=num_classes, key=kp)
        out = jax.block_until_ready(model(x))

        # Reference: same math as the PyTorch module, in plain JAX f32.
        w1 = model.w1.astype(jnp.float32)
        w2 = model.w2.astype(jnp.float32)
        ref = (x @ w1 + model.b1) @ w2 + model.b2

        assert out.shape == (batch, num_classes)
        assert jnp.allclose(out, ref, atol=1e-4, rtol=1e-4), (
            "max abs err = %f" % float(jnp.max(jnp.abs(out - ref))))

    k1, k2 = jax.random.split(key)
    _check(8, 128, 256, k1)   # aligned batch / class count
    _check(6, 128, 250, k2)   # ragged batch & class count (padding path)

    print("KERNEL_OK")
</pallas_src>

<mosaic_0001>
module attributes {stable_mosaic.version = 11 : i64} {
  func.func @_fused_mlp_kernel(%arg0: i32, %arg1: i32, %arg2: memref<8x128xf32, #tpu.memory_space<vmem>>, %arg3: memref<128x128xf32, #tpu.memory_space<vmem>>, %arg4: memref<1x128xf32, #tpu.memory_space<vmem>>, %arg5: memref<128x256xf32, #tpu.memory_space<vmem>>, %arg6: memref<1x256xf32, #tpu.memory_space<vmem>>, %arg7: memref<8x256xf32, #tpu.memory_space<vmem>>, %arg8: memref<8x128xf32, #tpu.memory_space<vmem>>) attributes {dimension_semantics = [#tpu.dimension_semantics<parallel>, #tpu.dimension_semantics<arbitrary>], iteration_bounds = array<i64: 1, 1>, scalar_prefetch = 0 : i64, scratch_operands = 1 : i64, tpu.core_type = #tpu.core_type<tc>, window_params = [{transform_indices = @transform_0, window_bounds = array<i64: 8, 128>}, {pipeline_mode = #tpu.pipeline_mode<synchronous>, transform_indices = @transform_1, window_bounds = array<i64: 128, 128>}, {pipeline_mode = #tpu.pipeline_mode<synchronous>, transform_indices = @transform_2, window_bounds = array<i64: 1, 128>}, {transform_indices = @transform_3, window_bounds = array<i64: 128, 256>}, {transform_indices = @transform_4, window_bounds = array<i64: 1, 256>}, {transform_indices = @transform_5, window_bounds = array<i64: 8, 256>}]} {
    %c0_i32 = arith.constant 0 : i32
    %0 = arith.cmpi eq, %arg1, %c0_i32 : i32
    %1 = arith.extui %0 : i1 to i32
    %c0_i32_0 = arith.constant 0 : i32
    %2 = arith.cmpi ne, %1, %c0_i32_0 : i32
    scf.if %2 {
      %c0_8 = arith.constant 0 : index
      %c0_9 = arith.constant 0 : index
      %10 = vector.load %arg2[%c0_8, %c0_9] : memref<8x128xf32, #tpu.memory_space<vmem>>, vector<8x128xf32>
      %c0_10 = arith.constant 0 : index
      %c0_11 = arith.constant 0 : index
      %11 = vector.load %arg3[%c0_10, %c0_11] : memref<128x128xf32, #tpu.memory_space<vmem>>, vector<128x128xf32>
      %cst_12 = arith.constant dense<0.000000e+00> : vector<8x128xf32>
      %12 = tpu.matmul %10, %11, %cst_12 {dimension_numbers = #tpu.dot_dimension_numbers<[1], [0], [0], [1], [0, 0, 1, 1], [], []>} : vector<8x128xf32>, vector<128x128xf32>, vector<8x128xf32> -> vector<8x128xf32>
      %c0_13 = arith.constant 0 : index
      %c0_14 = arith.constant 0 : index
      %13 = vector.load %arg4[%c0_13, %c0_14] : memref<1x128xf32, #tpu.memory_space<vmem>>, vector<1x128xf32>
      %14 = vector.broadcast %13 : vector<1x128xf32> to vector<8x128xf32>
      %15 = arith.addf %12, %14 : vector<8x128xf32>
      %c0_15 = arith.constant 0 : index
      %c0_16 = arith.constant 0 : index
      %16 = vector.load %arg8[%c0_15, %c0_16] : memref<8x128xf32, #tpu.memory_space<vmem>>, vector<8x128xf32>
      tpu.vector_store %arg8[%c0_15, %c0_16], %15 {strides = array<i32>} : memref<8x128xf32, #tpu.memory_space<vmem>>, vector<8x128xf32>,
    } else {
    }
    %c0 = arith.constant 0 : index
    %c0_1 = arith.constant 0 : index
    %3 = vector.load %arg8[%c0, %c0_1] : memref<8x128xf32, #tpu.memory_space<vmem>>, vector<8x128xf32>
    %c0_2 = arith.constant 0 : index
    %c0_3 = arith.constant 0 : index
    %4 = vector.load %arg5[%c0_2, %c0_3] : memref<128x256xf32, #tpu.memory_space<vmem>>, vector<128x256xf32>
    %cst = arith.constant dense<0.000000e+00> : vector<8x256xf32>
    %5 = tpu.matmul %3, %4, %cst {dimension_numbers = #tpu.dot_dimension_numbers<[1], [0], [0], [1], [0, 0, 1, 1], [], []>} : vector<8x128xf32>, vector<128x256xf32>, vector<8x256xf32> -> vector<8x256xf32>
    %c0_4 = arith.constant 0 : index
    %c0_5 = arith.constant 0 : index
    %6 = vector.load %arg6[%c0_4, %c0_5] : memref<1x256xf32, #tpu.memory_space<vmem>>, vector<1x256xf32>
    %7 = vector.broadcast %6 : vector<1x256xf32> to vector<8x256xf32>
    %8 = arith.addf %5, %7 : vector<8x256xf32>
    %c0_6 = arith.constant 0 : index
    %c0_7 = arith.constant 0 : index
    %9 = vector.load %arg7[%c0_6, %c0_7] : memref<8x256xf32, #tpu.memory_space<vmem>>, vector<8x256xf32>
    tpu.vector_store %arg7[%c0_6, %c0_7], %8 {strides = array<i32>} : memref<8x256xf32, #tpu.memory_space<vmem>>, vector<8x256xf32>,
    return
  }
  func.func @transform_0(%arg0: i32, %arg1: i32) -> (i32, i32) {
    %c0_i32 = arith.constant 0 : i32
    %c0_i32_0 = arith.constant 0 : i32
    return %arg0, %c0_i32 : i32, i32
  }
  func.func @transform_1(%arg0: i32, %arg1: i32) -> (i32, i32) {
    %c0_i32 = arith.constant 0 : i32
    %c0_i32_0 = arith.constant 0 : i32
    %c0_i32_1 = arith.constant 0 : i32
    return %c0_i32, %c0_i32_0 : i32, i32
  }
  func.func @transform_2(%arg0: i32, %arg1: i32) -> (i32, i32) {
    %c0_i32 = arith.constant 0 : i32
    %c0_i32_0 = arith.constant 0 : i32
    %c0_i32_1 = arith.constant 0 : i32
    return %c0_i32, %c0_i32_0 : i32, i32
  }
  func.func @transform_3(%arg0: i32, %arg1: i32) -> (i32, i32) {
    %c0_i32 = arith.constant 0 : i32
    %c0_i32_0 = arith.constant 0 : i32
    return %c0_i32, %arg1 : i32, i32
  }
  func.func @transform_4(%arg0: i32, %arg1: i32) -> (i32, i32) {
    %c0_i32 = arith.constant 0 : i32
    %c0_i32_0 = arith.constant 0 : i32
    return %c0_i32, %arg1 : i32, i32
  }
  func.func @transform_5(%arg0: i32, %arg1: i32) -> (i32, i32) {
    %c0_i32 = arith.constant 0 : i32
    return %arg0, %arg1 : i32, i32
  }
}

</mosaic_0001>

<llo_original>
// kernel: a_call__.1
$region0: #{a_call__.1}
  #allocation0 [shape = 'u32[]', space=smem, size = 0x4, offset = 0x4, fixed_abs, tag = 'smem constant byte address 0x4 - core index']
  #allocation1 [shape = 'u32[144,128]{1,0:T(1,128)}', space=vmem, size = 0x12000, scoped, tag = 'internal scratch']
  #allocation2 [shape = 'f32[8,128]{1,0:T(8,128)}', space=vmem, size = 0x1000, scoped, tag = 'scratch operand']
  %s0 = inlined_call_operand.hbm [shape: f32[8,128], index: 0, kind: input, shape index: {}]
  %s1 = inlined_call_operand.hbm [shape: f32[128,128], index: 1, kind: input, shape index: {}]
  %s2 = inlined_call_operand.vmem [shape: f32[1,128], index: 2, kind: input, shape index: {}]
  %s3 = inlined_call_operand.hbm [shape: f32[128,256], index: 3, kind: input, shape index: {}]
  %s4 = inlined_call_operand.vmem [shape: f32[1,256], index: 4, kind: input, shape index: {}]
  %s5 = inlined_call_operand.hbm [shape: f32[8,256], index: 5, kind: output, shape index: {}]
  %s6 = sld [smem:[#allocation0]]
  $region46: #{a_call__.1} parent=0
    _
  %s8 = ssub.s32 1, %s6
  %s9 = scalar_select 0, %s8, %s6
  $region1: #{a_call__.1} parent=0
    #allocation3 [shape = 'u8[4096]{0}', space=vmem, size = 0x1000, scoped, tag = 'input window, operand 0, single buffered']
    #allocation4 [shape = 's32[1]{0}', space=sflag, size = 0x4, scoped, tag = 'scoped memory for a_call__.1']
    #allocation5 [shape = 's32[1]{0}', space=sflag, size = 0x4, scoped, tag = 'scoped memory for a_call__.1']
    #allocation6 [shape = 'u8[65536]{0}', space=vmem, size = 0x10000, scoped, tag = 'input window, operand 1, single buffered']
    #allocation7 [shape = 's32[1]{0}', space=sflag, size = 0x4, scoped, tag = 'scoped memory for a_call__.1']
    #allocation8 [shape = 'u8[131072]{0}', space=vmem, size = 0x20000, scoped, tag = 'input window, operand 3, single buffered']
    #allocation9 [shape = 'u8[8192]{0}', space=vmem, size = 0x2000, scoped, tag = 'output window, operand 0, single buffered']
    %10 = vsyncpa [#allocation4], 0
    %11 = vsyncpa [#allocation7], 0
    %12 = vsyncpa [#allocation5], 0
    // Predicated region
    $region2: #{a_call__.1} parent=1 // pred_check
      _
    $region3: #{a_call__.1} parent=1 // pred_check_branch
      %14 = sbr.rel (0) target = $region5
    $region4: #{a_call__.1} parent=1 // pred_region
      %s16 = ssub.s32 128, 128
      %17 = vsyncadd [#allocation4], %s16
      %s19 = sshll.u32 [#allocation3], 4
      %s20 = int_to_ptr.vmem [resolvable:$true] %s19
      %22 = dma.hbm_to_vmem [thread:$0]  %s0, 128, %s20, [#allocation4]
    $region5: #{a_call__.1} parent=1 // pred_fallthru
      _
    // Predicated region
    $region6: #{a_call__.1} parent=1 // pred_check
      _
    $region7: #{a_call__.1} parent=1 // pred_check_branch
      %24 = sbr.rel (0) target = $region9
    $region8: #{a_call__.1} parent=1 // pred_region
      %s26 = ssub.s32 2048, 2048
      %27 = vsyncadd [#allocation7], %s26
      %s28 = sshll.u32 [#allocation6], 4
      %s29 = int_to_ptr.vmem [resolvable:$true] %s28
      %34 = dma.hbm_to_vmem [thread:$0]  %s1, 2048, %s29, [#allocation7], 128, 128, 8
    $region9: #{a_call__.1} parent=1 // pred_fallthru
      _
    // Predicated region
    $region10: #{a_call__.1} parent=1 // pred_check
      _
    $region11: #{a_call__.1} parent=1 // pred_check_branch
      %36 = sbr.rel (0) target = $region13
    $region12: #{a_call__.1} parent=1 // pred_region
      _
    $region13: #{a_call__.1} parent=1 // pred_fallthru
      _
    // Predicated region
    $region14: #{a_call__.1} parent=1 // pred_check
      _
    $region15: #{a_call__.1} parent=1 // pred_check_branch
      %38 = sbr.rel (0) target = $region17
    $region16: #{a_call__.1} parent=1 // pred_region
      %s40 = ssub.s32 4096, 4096
      %41 = vsyncadd [#allocation7], %s40
      %s42 = sshll.u32 [#allocation8], 4
      %s43 = int_to_ptr.vmem [resolvable:$true] %s42
      %48 = dma.hbm_to_vmem [thread:$0]  %s3, 4096, %s43, [#allocation7], 256, 256, 16
    $region17: #{a_call__.1} parent=1 // pred_fallthru
      _
    // Predicated region
    $region18: #{a_call__.1} parent=1 // pred_check
      _
    $region19: #{a_call__.1} parent=1 // pred_check_branch
      %50 = sbr.rel (0) target = $region21
    $region20: #{a_call__.1} parent=1 // pred_region
      _
    $region21: #{a_call__.1} parent=1 // pred_fallthru
      _
    // Predicated region
    $region22: #{a_call__.1} parent=1 // pred_check
      _
    $region23: #{a_call__.1} parent=1 // pred_check_branch
      %52 = sbr.rel (0) target = $region25
    $region24: #{a_call__.1} parent=1 // pred_region
      %53 = dma.done [#allocation4], 128
    $region25: #{a_call__.1} parent=1 // pred_fallthru
      _
    // Predicated region
    $region26: #{a_call__.1} parent=1 // pred_check
      _
    $region27: #{a_call__.1} parent=1 // pred_check_branch
      %55 = sbr.rel (0) target = $region29
    $region28: #{a_call__.1} parent=1 // pred_region
      %56 = dma.done [#allocation7], 2048
    $region29: #{a_call__.1} parent=1 // pred_fallthru
      _
    // Predicated region
    $region30: #{a_call__.1} parent=1 // pred_check
      _
    $region31: #{a_call__.1} parent=1 // pred_check_branch
      %58 = sbr.rel (0) target = $region33
    $region32: #{a_call__.1} parent=1 // pred_region
      %59 = dma.done [#allocation7], 4096
    $region33: #{a_call__.1} parent=1 // pred_fallthru
      _
    %p60 = scmp.eq.s32.totalorder 0, 0
    // Predicated region
    $region34: #{a_call__.1} parent=1 // pred_check
      %p61 = pneg %p60
    $region35: #{a_call__.1} parent=1 // pred_check_branch
      %63 = sbr.rel (%p61) target = $region37
    $region36: #{a_call__.1} parent=1 // pred_region
      %v64 = vld [vmem:[#allocation3] sm:$0xff]
      %v65 = vld [vmem:[#allocation6] sm:$0xff]
      %v66 = vld [vmem:[#allocation6 + $0x8] sm:$0xff]
      %v67 = vld [vmem:[#allocation6 + $0x10] sm:$0xff]
      %v68 = vld [vmem:[#allocation6 + $0x18] sm:$0xff]
      %v69 = vld [vmem:[#allocation6 + $0x20] sm:$0xff]
      %v70 = vld [vmem:[#allocation6 + $0x28] sm:$0xff]
      %v71 = vld [vmem:[#allocation6 + $0x30] sm:$0xff]
      %v72 = vld [vmem:[#allocation6 + $0x38] sm:$0xff]
      %v73 = vld [vmem:[#allocation6 + $0x40] sm:$0xff]
      %v74 = vld [vmem:[#allocation6 + $0x48] sm:$0xff]
      %v75 = vld [vmem:[#allocation6 + $0x50] sm:$0xff]
      %v76 = vld [vmem:[#allocation6 + $0x58] sm:$0xff]
      %v77 = vld [vmem:[#allocation6 + $0x60] sm:$0xff]
      %v78 = vld [vmem:[#allocation6 + $0x68] sm:$0xff]
      %v79 = vld [vmem:[#allocation6 + $0x70] sm:$0xff]
      %v80 = vld [vmem:[#allocation6 + $0x78] sm:$0xff]
      %v81 = vld [vmem:[%s2] sm:$0x1]
      %v83 = vlaneseq
      %v84 = vshrl.u32 %v83, 7
      %v85 = vsub.s32 0, %v84
      %v86 = vrot.slane %v81, %v85
      %88 = vmatprep.subr.mxu0 0.0
      %89 = vmatpush1.msra.mxu0 %v80
      %90 = vmatprep.subr.mxu0 0.0
      %91 = vmatpush1.msra.mxu0 %v79
      %92 = vmatprep.subr.mxu0 0.0
      %93 = vmatpush1.msra.mxu0 %v78
      %94 = vmatprep.subr.mxu0 0.0
      %95 = vmatpush1.msra.mxu0 %v77
      %96 = vmatprep.subr.mxu0 0.0
      %97 = vmatpush1.msra.mxu0 %v76
      %98 = vmatprep.subr.mxu0 0.0
      %99 = vmatpush1.msra.mxu0 %v75
      %100 = vmatprep.subr.mxu0 0.0
      %101 = vmatpush1.msra.mxu0 %v74
      %102 = vmatprep.subr.mxu0 0.0
      %103 = vmatpush1.msra.mxu0 %v73
      %104 = vmatprep.subr.mxu0 0.0
      %105 = vmatpush1.msra.mxu0 %v72
      %106 = vmatprep.subr.mxu0 0.0
      %107 = vmatpush1.msra.mxu0 %v71
      %108 = vmatprep.subr.mxu0 0.0
      %109 = vmatpush1.msra.mxu0 %v70
      %110 = vmatprep.subr.mxu0 0.0
      %111 = vmatpush1.msra.mxu0 %v69
      %112 = vmatprep.subr.mxu0 0.0
      %113 = vmatpush1.msra.mxu0 %v68
      %114 = vmatprep.subr.mxu0 0.0
      %115 = vmatpush1.msra.mxu0 %v67
      %116 = vmatprep.subr.mxu0 0.0
      %117 = vmatpush1.msra.mxu0 %v66
      %118 = vmatprep.subr.mxu0 0.0
      %119 = vmatpush1.msra.mxu0 %v65
      %120 = vmatprep.subr.mxu0 0.0
      %121 = vmatpush2.msra.mxu0 0.0
      %122 = vmatprep.subr.mxu0 0.0
      %123 = vmatpush2.msra.mxu0 0.0
      %124 = vmatprep.subr.mxu0 0.0
      %125 = vmatpush2.msra.mxu0 0.0
      %126 = vmatprep.subr.mxu0 0.0
      %127 = vmatpush2.msra.mxu0 0.0
      %128 = vmatprep.subr.mxu0 0.0
      %129 = vmatpush2.msra.mxu0 0.0
      %130 = vmatprep.subr.mxu0 0.0
      %131 = vmatpush2.msra.mxu0 0.0
      %132 = vmatprep.subr.mxu0 0.0
      %133 = vmatpush2.msra.mxu0 0.0
      %134 = vmatprep.subr.mxu0 0.0
      %135 = vmatpush2.msra.mxu0 0.0
      %136 = vmatprep.subr.mxu0 0.0
      %137 = vmatpush2.msra.mxu0 0.0
      %138 = vmatprep.subr.mxu0 0.0
      %139 = vmatpush2.msra.mxu0 0.0
      %140 = vmatprep.subr.mxu0 0.0
      %141 = vmatpush2.msra.mxu0 0.0
      %142 = vmatprep.subr.mxu0 0.0
      %143 = vmatpush2.msra.mxu0 0.0
      %144 = vmatprep.subr.mxu0 0.0
      %145 = vmatpush2.msra.mxu0 0.0
      %146 = vmatprep.subr.mxu0 0.0
      %147 = vmatpush2.msra.mxu0 0.0
      %148 = vmatprep.subr.mxu0 0.0
      %149 = vmatpush2.msra.mxu0 0.0
      %150 = vmatprep.subr.mxu0 0.0
      %151 = vmatpush2.msra.mxu0 0.0
      %152 = vmatprep.mubr.f32.mxu0 0.0
      %153 = vmatmul.mubr.f32.gmra.mxu0 %v64
      %v154 = vpop.f32.mrf.mxu0
      %v155 = vadd.f32 %v86, %v154
      %v156 = vpop.f32.mrf.mxu0
      %157 = vdwg.mxu0
      %158 = vst [vmem:[#allocation2] sm:$0xff] %v155
    $region37: #{a_call__.1} parent=1 // pred_fallthru
      _
    %v159 = vld [vmem:[#allocation2] sm:$0xff]
    %v160 = vld [vmem:[#allocation8] sm:$0xff]
    %v161 = vld [vmem:[#allocation8 + $0x8] sm:$0xff]
    %v162 = vld [vmem:[#allocation8 + $0x10] sm:$0xff]
    %v163 = vld [vmem:[#allocation8 + $0x18] sm:$0xff]
    %v164 = vld [vmem:[#allocation8 + $0x20] sm:$0xff]
    %v165 = vld [vmem:[#allocation8 + $0x28] sm:$0xff]
    %v166 = vld [vmem:[#allocation8 + $0x30] sm:$0xff]
    %v167 = vld [vmem:[#allocation8 + $0x38] sm:$0xff]
    %v168 = vld [vmem:[#allocation8 + $0x40] sm:$0xff]
    %v169 = vld [vmem:[#allocation8 + $0x48] sm:$0xff]
    %v170 = vld [vmem:[#allocation8 + $0x50] sm:$0xff]
    %v171 = vld [vmem:[#allocation8 + $0x58] sm:$0xff]
    %v172 = vld [vmem:[#allocation8 + $0x60] sm:$0xff]
    %v173 = vld [vmem:[#allocation8 + $0x68] sm:$0xff]
    %v174 = vld [vmem:[#allocation8 + $0x70] sm:$0xff]
    %v175 = vld [vmem:[#allocation8 + $0x78] sm:$0xff]
    %v176 = vld [vmem:[#allocation8 + $0x80] sm:$0xff]
    %v177 = vld [vmem:[#allocation8 + $0x88] sm:$0xff]
    %v178 = vld [vmem:[#allocation8 + $0x90] sm:$0xff]
    %v179 = vld [vmem:[#allocation8 + $0x98] sm:$0xff]
    %v180 = vld [vmem:[#allocation8 + $0xa0] sm:$0xff]
    %v181 = vld [vmem:[#allocation8 + $0xa8] sm:$0xff]
    %v182 = vld [vmem:[#allocation8 + $0xb0] sm:$0xff]
    %v183 = vld [vmem:[#allocation8 + $0xb8] sm:$0xff]
    %v184 = vld [vmem:[#allocation8 + $0xc0] sm:$0xff]
    %v185 = vld [vmem:[#allocation8 + $0xc8] sm:$0xff]
    %v186 = vld [vmem:[#allocation8 + $0xd0] sm:$0xff]
    %v187 = vld [vmem:[#allocation8 + $0xd8] sm:$0xff]
    %v188 = vld [vmem:[#allocation8 + $0xe0] sm:$0xff]
    %v189 = vld [vmem:[#allocation8 + $0xe8] sm:$0xff]
    %v190 = vld [vmem:[#allocation8 + $0xf0] sm:$0xff]
    %v191 = vld [vmem:[#allocation8 + $0xf8] sm:$0xff]
    %v192 = vld [vmem:[%s4] sm:$0x3]
    %v194 = vlaneseq
    %v195 = vshrl.u32 %v194, 7
    %v196 = vsub.s32 0, %v195
    %v197 = vrot.slane %v192, %v196
    %v198 = vlaneseq
    %v199 = vshrl.u32 %v198, 7
    %v200 = vsub.s32 1, %v199
    %v201 = vrot.slane %v192, %v200
    %204 = vmatprep.subr.mxu0 %v191
    %205 = vmatpush1.msra.mxu0 %v190
    %206 = vmatprep.subr.mxu0 %v189
    %207 = vmatpush1.msra.mxu0 %v188
    %208 = vmatprep.subr.mxu0 %v187
    %209 = vmatpush1.msra.mxu0 %v186
    %210 = vmatprep.subr.mxu0 %v185
    %211 = vmatpush1.msra.mxu0 %v184
    %212 = vmatprep.subr.mxu0 %v183
    %213 = vmatpush1.msra.mxu0 %v182
    %214 = vmatprep.subr.mxu0 %v181
    %215 = vmatpush1.msra.mxu0 %v180
    %216 = vmatprep.subr.mxu0 %v179
    %217 = vmatpush1.msra.mxu0 %v178
    %218 = vmatprep.subr.mxu0 %v177
    %219 = vmatpush1.msra.mxu0 %v176
    %220 = vmatprep.subr.mxu0 %v175
    %221 = vmatpush1.msra.mxu0 %v174
    %222 = vmatprep.subr.mxu0 %v173
    %223 = vmatpush1.msra.mxu0 %v172
    %224 = vmatprep.subr.mxu0 %v171
    %225 = vmatpush1.msra.mxu0 %v170
    %226 = vmatprep.subr.mxu0 %v169
    %227 = vmatpush1.msra.mxu0 %v168
    %228 = vmatprep.subr.mxu0 %v167
    %229 = vmatpush1.msra.mxu0 %v166
    %230 = vmatprep.subr.mxu0 %v165
    %231 = vmatpush1.msra.mxu0 %v164
    %232 = vmatprep.subr.mxu0 %v163
    %233 = vmatpush1.msra.mxu0 %v162
    %234 = vmatprep.subr.mxu0 %v161
    %235 = vmatpush1.msra.mxu0 %v160
    %236 = vmatprep.subr.mxu0 0.0
    %237 = vmatpush2.msra.mxu0 0.0
    %238 = vmatprep.subr.mxu0 0.0
    %239 = vmatpush2.msra.mxu0 0.0
    %240 = vmatprep.subr.mxu0 0.0
    %241 = vmatpush2.msra.mxu0 0.0
    %242 = vmatprep.subr.mxu0 0.0
    %243 = vmatpush2.msra.mxu0 0.0
    %244 = vmatprep.subr.mxu0 0.0
    %245 = vmatpush2.msra.mxu0 0.0
    %246 = vmatprep.subr.mxu0 0.0
    %247 = vmatpush2.msra.mxu0 0.0
    %248 = vmatprep.subr.mxu0 0.0
    %249 = vmatpush2.msra.mxu0 0.0
    %250 = vmatprep.subr.mxu0 0.0
    %251 = vmatpush2.msra.mxu0 0.0
    %252 = vmatprep.subr.mxu0 0.0
    %253 = vmatpush2.msra.mxu0 0.0
    %254 = vmatprep.subr.mxu0 0.0
    %255 = vmatpush2.msra.mxu0 0.0
    %256 = vmatprep.subr.mxu0 0.0
    %257 = vmatpush2.msra.mxu0 0.0
    %258 = vmatprep.subr.mxu0 0.0
    %259 = vmatpush2.msra.mxu0 0.0
    %260 = vmatprep.subr.mxu0 0.0
    %261 = vmatpush2.msra.mxu0 0.0
    %262 = vmatprep.subr.mxu0 0.0
    %263 = vmatpush2.msra.mxu0 0.0
    %264 = vmatprep.subr.mxu0 0.0
    %265 = vmatpush2.msra.mxu0 0.0
    %266 = vmatprep.subr.mxu0 0.0
    %267 = vmatpush2.msra.mxu0 0.0
    %268 = vmatprep.mubr.f32.mxu0 0.0
    %269 = vmatmul.mubr.f32.gmra.mxu0 %v159
    %v270 = vpop.f32.mrf.mxu0
    %v271 = vadd.f32 %v197, %v270
    %v272 = vpop.f32.mrf.mxu0
    %v273 = vadd.f32 %v201, %v272
    %274 = vdwg.mxu0
    %275 = vst [vmem:[#allocation9] sm:$0xff] %v271
    %276 = vst [vmem:[#allocation9 + $0x8] sm:$0xff] %v273
    // Predicated region
    $region38: #{a_call__.1} parent=1 // pred_check
      _
    $region39: #{a_call__.1} parent=1 // pred_check_branch
      %278 = sbr.rel (0) target = $region41
    $region40: #{a_call__.1} parent=1 // pred_region
      %s280 = ssub.s32 256, 256
      %281 = vsyncadd [#allocation5], %s280
      %s283 = sshll.u32 [#allocation9], 4
      %s284 = int_to_ptr.vmem [resolvable:$true] %s283
      %286 = dma.vmem_to_hbm [thread:$0]  %s284, 256, %s5, [#allocation5]
    $region41: #{a_call__.1} parent=1 // pred_fallthru
      _
    // Predicated region
    $region42: #{a_call__.1} parent=1 // pred_check
      _
    $region43: #{a_call__.1} parent=1 // pred_check_branch
      %288 = sbr.rel (0) target = $region45
    $region44: #{a_call__.1} parent=1 // pred_region
      %289 = dma.done [#allocation5], 256
    $region45: #{a_call__.1} parent=1 // pred_fallthru
      _
    %290 = vsyncpa [#allocation4], 1
    %291 = vsyncpa [#allocation7], 1
    %292 = vsyncpa [#allocation5], 1

</llo_original>
